<compile_context>
chip_gen: v6e
topology: v6e:2x2x1
jax: 0.10.0
libtpu: 0.0.40
codegen_flags: <defaults>
</compile_context>

<pallas_src>
import jax
import jax.numpy as jnp
from jax.experimental import pallas as pl
from jax.experimental.pallas import tpu as pltpu

TOP_K = 5
LANE = 128                       # lane width of the merged preds/loss output
_NEG_KEY = -(2 ** 31) + 1        # "already picked" sentinel for packed int32 keys
                                 # (plain Python int -> becomes a jaxpr literal,
                                 #  nothing is captured by the kernel closure)


def _round_up(x, m):
    return (x + m - 1) // m * m


def _vmem_capacity_bytes():
    """Per-core VMEM capacity; conservative v7x default if the query fails."""
    try:
        cap = int(pltpu.get_tpu_info().vmem_capacity_bytes)
        if cap > 0:
            return cap
    except Exception:
        pass
    return 64 * 1024 * 1024


def _pick_tile_rows(batch, num_nodes):
    """Pick (TB, vmem_limit_bytes), generation aware.

    The kernel body keeps roughly 14 live (TB, N) f32-equivalent buffers
    (double-buffered e/a inputs + logits output, log-probs, z/exp, col,
    packed keys, work, selects), so per-row cost ~= 14 * N * 4 bytes.
    v5e/v6e have 128 MiB VMEM (16/32 MiB default scoped), v7x has 64 MiB,
    so the scoped limit is set explicitly to ~3/4 of physical.
    """
    cap = _vmem_capacity_bytes()
    vmem_limit = min((cap * 3) // 4, 96 * 1024 * 1024)   # v5e/v6e: 96 MiB, v7x: 48 MiB
    per_row = 14 * num_nodes * 4
    budget = (vmem_limit * 3) // 5                       # slack for compiler scratch
    tb = max(8, min(512, budget // max(per_row, 1)))
    tb = (tb // 8) * 8
    # Keep >= ~4 grid steps when the batch permits: enables DMA/compute overlap
    # and megacore sharding (grid=1 would idle the 2nd v7x TensorCore).
    b8 = _round_up(batch, 8)
    tb = min(tb, max(8, _round_up((b8 + 3) // 4, 8)))
    tb = min(tb, b8)
    return tb, vmem_limit


def _log_softmax_rows(x):
    m = jnp.max(x, axis=1, keepdims=True)
    z = x - m
    return z - jnp.log(jnp.sum(jnp.exp(z), axis=1, keepdims=True))


def ensemble_kernel(w_ref, e_ref, a_ref, nf_ref, tgt_ref, exm_ref,
                    logits_ref, misc_ref):
    # Inputs may be bf16; do all math in f32 (v5e VPU/EUP have no bf16 path).
    e = e_ref[...].astype(jnp.float32)            # (TB, N)
    a = a_ref[...].astype(jnp.float32)            # (TB, N)

    # F.log_softmax(e_logits, dim=1) / F.log_softmax(a_logits, dim=1)
    e_lp = _log_softmax_rows(e)
    a_lp = _log_softmax_rows(a)

    # logits = e_logprobs * w[0] + a_logprobs * w[1] + log_node_filter_mask
    logits = e_lp * w_ref[0] + a_lp * w_ref[1] + nf_ref[...]   # (1,N) broadcasts
    # Largest writeback stream -> store in the input dtype (bf16 in => bf16 out).
    logits_ref[...] = logits.astype(logits_ref.dtype)

    tb, n = logits.shape
    col = jax.lax.broadcasted_iota(jnp.int32, (tb, n), 1)

    # CrossEntropyLoss(reduce=False) * mask:  -(logits[t] - m - lse).
    # No third full log_softmax; the target gather reuses z = logits - m.
    m = jnp.max(logits, axis=1, keepdims=True)                        # (TB,1)
    z = logits - m
    lse = jnp.log(jnp.sum(jnp.exp(z), axis=1, keepdims=True))         # (TB,1)
    tgt_z = jnp.sum(jnp.where(col == tgt_ref[...], z, 0.0),
                    axis=1, keepdims=True)                            # (TB,1)
    nll = (lse - tgt_z) * exm_ref[...]                                # (TB,1)

    # torch.topk(logits, top_k, dim=1)[1] — packed-key argmax: ONE cross-lane
    # max per pick.  f32 -> order-preserving int32 key, low ceil(log2(N)) bits
    # carry (N-1-col) so ties break on the lowest index (torch semantics);
    # near-ties may reorder within ~2^-idx_bits relative precision.
    idx_bits = max(1, (n - 1).bit_length())
    idx_mask = (1 << idx_bits) - 1
    bits = jax.lax.bitcast_convert_type(logits, jnp.int32)
    ordered = bits ^ ((bits >> 31) & 0x7FFFFFFF)       # monotone f32-bits -> i32
    keys = (ordered & ~idx_mask) | ((n - 1) - col)     # unique per row

    lane = jax.lax.broadcasted_iota(jnp.int32, (tb, LANE), 1)
    out = jnp.zeros((tb, LANE), jnp.int32)
    work = keys
    for k in range(TOP_K):
        best = jnp.max(work, axis=1, keepdims=True)    # value+index in one reduce
        idx = (n - 1) - (best & idx_mask)
        out = jnp.where(lane == k, idx, out)
        work = jnp.where(work == best, _NEG_KEY, work)  # keys unique -> masks 1 col

    # Merged lane-dense small output: preds in lanes 0..TOP_K-1, loss bits in
    # lane TOP_K.  One full-width unmasked store, one output stream instead of 2.
    loss_bits = jax.lax.bitcast_convert_type(nll, jnp.int32)
    out = jnp.where(lane == TOP_K, loss_bits, out)
    misc_ref[...] = out


def ensemble_forward(weight, e_logits, a_logits, node_filter_mask, targets,
                     example_mask, top_k=TOP_K):
    """weight: (2,), e/a_logits: (B, N) float (f32 or bf16),
       node_filter_mask: (N,) bool, targets: (B,) int, example_mask: (B,)."""
    if top_k > TOP_K:
        raise ValueError(f"top_k={top_k} exceeds compiled TOP_K={TOP_K}")
    B, N = e_logits.shape
    TB, vmem_limit = _pick_tile_rows(B, N)
    B_pad = _round_up(B, TB)
    pad = B_pad - B
    if pad:
        e_logits = jnp.pad(e_logits, ((0, pad), (0, 0)))
        a_logits = jnp.pad(a_logits, ((0, pad), (0, 0)))
        targets = jnp.pad(targets, (0, pad))
        example_mask = jnp.pad(example_mask, (0, pad))

    # Keep the finite -999999 sentinel (never -inf): masked rows rely on
    # example_mask * finite_loss == 0 (no inf*0 = NaN).
    log_nf = jnp.where(node_filter_mask, 0.0, -999999.0).astype(jnp.float32)
    log_nf = log_nf.reshape(1, N)
    tgt2d = targets.astype(jnp.int32).reshape(B_pad, 1)
    exm2d = example_mask.astype(jnp.float32).reshape(B_pad, 1)

    out_shapes = (
        jax.ShapeDtypeStruct((B_pad, N), e_logits.dtype),   # logits (input dtype)
        jax.ShapeDtypeStruct((B_pad, LANE), jnp.int32),     # preds + loss bits
    )

    io_bytes = jnp.dtype(e_logits.dtype).itemsize
    cost = pl.CostEstimate(
        flops=40 * B_pad * N,                 # softmax / weighted-sum / topk VPU work
        transcendentals=3 * B_pad * N,        # 3 exp passes + per-row logs
        bytes_accessed=3 * io_bytes * B_pad * N + 4 * B_pad * (LANE + 2) + 4 * N,
    )

    logits, merged = pl.pallas_call(
        ensemble_kernel,
        out_shape=out_shapes,
        grid=(B_pad // TB,),
        in_specs=[
            pl.BlockSpec(memory_space=pltpu.MemorySpace.SMEM),  # weight (2,)
            pl.BlockSpec((TB, N), lambda i: (i, 0)),            # e_logits
            pl.BlockSpec((TB, N), lambda i: (i, 0)),            # a_logits
            pl.BlockSpec((1, N), lambda i: (0, 0)),             # node-filter (constant)
            pl.BlockSpec((TB, 1), lambda i: (i, 0)),            # targets
            pl.BlockSpec((TB, 1), lambda i: (i, 0)),            # example mask
        ],
        out_specs=(
            pl.BlockSpec((TB, N), lambda i: (i, 0)),
            pl.BlockSpec((TB, LANE), lambda i: (i, 0)),
        ),
        compiler_params=pltpu.CompilerParams(
            dimension_semantics=("parallel",),                  # megacore on v7x
            vmem_limit_bytes=vmem_limit),
        cost_estimate=cost,
    )(weight.astype(jnp.float32), e_logits, a_logits, log_nf, tgt2d, exm2d)

    k_eff = min(top_k, N, TOP_K)
    losses = jax.lax.bitcast_convert_type(merged[:B, TOP_K], jnp.float32)
    preds = merged[:B, :k_eff]
    # TODO(synk): the torch module only logs a warning when losses contain NaN;
    # that host-side check (and the opaque sub-models / node_filter) stay outside.
    return logits[:B], losses, preds


if __name__ == "__main__":
    key = jax.random.PRNGKey(0)
    B, N = 8, 128          # num_examples x num_nodes (nodes on lane axis)
    k1, k2, k3, k4 = jax.random.split(key, 4)

    # Synthetic outputs of the (opaque) encoding / alignment sub-models.
    e_logits = jax.random.normal(k1, (B, N), dtype=jnp.float32)
    a_logits = jax.random.normal(k2, (B, N), dtype=jnp.float32)
    # Synthetic node_filter(web_page, code) output.
    node_filter_mask = jax.random.bernoulli(k3, 0.7, (N,))
    # targets = xid_to_ref.get(target_xid, 0); mask = target present AND unfiltered.
    targets = jax.random.randint(k4, (B,), 0, N)
    example_mask = node_filter_mask[targets].astype(jnp.float32)
    # self._weight = FT([1.0, 1.0])
    weight = jnp.array([1.0, 1.0], dtype=jnp.float32)

    logits, losses, preds = ensemble_forward(
        weight, e_logits, a_logits, node_filter_mask, targets, example_mask)
    jax.block_until_ready((logits, losses, preds))

    # Pure-JAX reference check.
    e_lp = jax.nn.log_softmax(e_logits, axis=1)
    a_lp = jax.nn.log_softmax(a_logits, axis=1)
    ref_logits = (e_lp * weight[0] + a_lp * weight[1]
                  + jnp.where(node_filter_mask, 0.0, -999999.0)[None, :])
    ref_ls = jax.nn.log_softmax(ref_logits, axis=1)
    ref_loss = -jnp.take_along_axis(ref_ls, targets[:, None], axis=1)[:, 0]
    ref_loss = ref_loss * example_mask
    ref_pred = jax.lax.top_k(ref_logits, TOP_K)[1]

    assert logits.shape == (B, N) and preds.shape == (B, TOP_K)
    assert jnp.allclose(logits, ref_logits, atol=1e-4), "logits mismatch"
    assert jnp.allclose(losses, ref_loss, atol=1e-4), "losses mismatch"
    # Packed-key top-k may reorder exact/near ties (< ~2^-16 relative), so
    # compare the selected logit VALUES against the true top-k values.
    pred_vals = jnp.take_along_axis(ref_logits, preds, axis=1)
    ref_vals = jnp.take_along_axis(ref_logits, ref_pred, axis=1)
    assert jnp.allclose(pred_vals, ref_vals, atol=1e-3), "top-k mismatch"
    assert bool(jnp.isfinite(losses.sum())), "Losses has NaN"

    print("KERNEL_OK")
</pallas_src>

<mosaic_0001>
module attributes {stable_mosaic.version = 11 : i64} {
  func.func @ensemble_kernel(%arg0: i32, %arg1: memref<2xf32, #tpu.memory_space<smem>>, %arg2: memref<8x128xf32, #tpu.memory_space<vmem>>, %arg3: memref<8x128xf32, #tpu.memory_space<vmem>>, %arg4: memref<1x128xf32, #tpu.memory_space<vmem>>, %arg5: memref<8x1xi32, #tpu.memory_space<vmem>>, %arg6: memref<8x1xf32, #tpu.memory_space<vmem>>, %arg7: memref<8x128xf32, #tpu.memory_space<vmem>>, %arg8: memref<8x128xi32, #tpu.memory_space<vmem>>) attributes {dimension_semantics = [#tpu.dimension_semantics<parallel>], iteration_bounds = array<i64: 1>, scalar_prefetch = 0 : i64, scratch_operands = 0 : i64, tpu.core_type = #tpu.core_type<tc>, window_params = [{transform_indices = @transform_0, window_bounds = array<i64: 2>}, {transform_indices = @transform_1, window_bounds = array<i64: 8, 128>}, {transform_indices = @transform_2, window_bounds = array<i64: 8, 128>}, {pipeline_mode = #tpu.pipeline_mode<synchronous>, transform_indices = @transform_3, window_bounds = array<i64: 1, 128>}, {transform_indices = @transform_4, window_bounds = array<i64: 8, 1>}, {transform_indices = @transform_5, window_bounds = array<i64: 8, 1>}, {transform_indices = @transform_6, window_bounds = array<i64: 8, 128>}, {transform_indices = @transform_7, window_bounds = array<i64: 8, 128>}]} {
    %c0 = arith.constant 0 : index
    %c0_0 = arith.constant 0 : index
    %0 = vector.load %arg2[%c0, %c0_0] : memref<8x128xf32, #tpu.memory_space<vmem>>, vector<8x128xf32>
    %c0_1 = arith.constant 0 : index
    %c0_2 = arith.constant 0 : index
    %1 = vector.load %arg3[%c0_1, %c0_2] : memref<8x128xf32, #tpu.memory_space<vmem>>, vector<8x128xf32>
    %cst = arith.constant dense<0xFF800000> : vector<8xf32>
    %2 = vector.multi_reduction <maximumf>, %0, %cst [1] : vector<8x128xf32> to vector<8xf32>
    %3 = vector.shape_cast %2 : vector<8xf32> to vector<8x1xf32>
    %4 = vector.broadcast %3 : vector<8x1xf32> to vector<8x128xf32>
    %5 = arith.subf %0, %4 : vector<8x128xf32>
    %6 = math.exp %5 : vector<8x128xf32>
    %cst_3 = arith.constant dense<0.000000e+00> : vector<8xf32>
    %7 = vector.multi_reduction <add>, %6, %cst_3 [1] : vector<8x128xf32> to vector<8xf32>
    %8 = vector.shape_cast %7 : vector<8xf32> to vector<8x1xf32>
    %9 = math.log %8 : vector<8x1xf32>
    %10 = vector.broadcast %9 : vector<8x1xf32> to vector<8x128xf32>
    %11 = arith.subf %5, %10 : vector<8x128xf32>
    %cst_4 = arith.constant dense<0xFF800000> : vector<8xf32>
    %12 = vector.multi_reduction <maximumf>, %1, %cst_4 [1] : vector<8x128xf32> to vector<8xf32>
    %13 = vector.shape_cast %12 : vector<8xf32> to vector<8x1xf32>
    %14 = vector.broadcast %13 : vector<8x1xf32> to vector<8x128xf32>
    %15 = arith.subf %1, %14 : vector<8x128xf32>
    %16 = math.exp %15 : vector<8x128xf32>
    %cst_5 = arith.constant dense<0.000000e+00> : vector<8xf32>
    %17 = vector.multi_reduction <add>, %16, %cst_5 [1] : vector<8x128xf32> to vector<8xf32>
    %18 = vector.shape_cast %17 : vector<8xf32> to vector<8x1xf32>
    %19 = math.log %18 : vector<8x1xf32>
    %20 = vector.broadcast %19 : vector<8x1xf32> to vector<8x128xf32>
    %21 = arith.subf %15, %20 : vector<8x128xf32>
    %c0_6 = arith.constant 0 : index
    %22 = memref.load %arg1[%c0_6] : memref<2xf32, #tpu.memory_space<smem>>
    %23 = vector.broadcast %22 : f32 to vector<8x128xf32>
    %24 = arith.mulf %11, %23 : vector<8x128xf32>
    %c1 = arith.constant 1 : index
    %25 = memref.load %arg1[%c1] : memref<2xf32, #tpu.memory_space<smem>>
    %26 = vector.broadcast %25 : f32 to vector<8x128xf32>
    %27 = arith.mulf %21, %26 : vector<8x128xf32>
    %28 = arith.addf %24, %27 : vector<8x128xf32>
    %c0_7 = arith.constant 0 : index
    %c0_8 = arith.constant 0 : index
    %29 = vector.load %arg4[%c0_7, %c0_8] : memref<1x128xf32, #tpu.memory_space<vmem>>, vector<1x128xf32>
    %30 = vector.broadcast %29 : vector<1x128xf32> to vector<8x128xf32>
    %31 = arith.addf %28, %30 : vector<8x128xf32>
    %c0_9 = arith.constant 0 : index
    %c0_10 = arith.constant 0 : index
    %32 = vector.load %arg7[%c0_9, %c0_10] : memref<8x128xf32, #tpu.memory_space<vmem>>, vector<8x128xf32>
    tpu.vector_store %arg7[%c0_9, %c0_10], %31 {strides = array<i32>} : memref<8x128xf32, #tpu.memory_space<vmem>>, vector<8x128xf32>,
    %33 = tpu.iota {dimensions = array<i32: 1>} : vector<8x128xi32>
    %cst_11 = arith.constant dense<0xFF800000> : vector<8xf32>
    %34 = vector.multi_reduction <maximumf>, %31, %cst_11 [1] : vector<8x128xf32> to vector<8xf32>
    %35 = vector.shape_cast %34 : vector<8xf32> to vector<8x1xf32>
    %36 = vector.broadcast %35 : vector<8x1xf32> to vector<8x128xf32>
    %37 = arith.subf %31, %36 : vector<8x128xf32>
    %38 = math.exp %37 : vector<8x128xf32>
    %cst_12 = arith.constant dense<0.000000e+00> : vector<8xf32>
    %39 = vector.multi_reduction <add>, %38, %cst_12 [1] : vector<8x128xf32> to vector<8xf32>
    %40 = vector.shape_cast %39 : vector<8xf32> to vector<8x1xf32>
    %41 = math.log %40 : vector<8x1xf32>
    %c0_13 = arith.constant 0 : index
    %c0_14 = arith.constant 0 : index
    %42 = vector.load %arg5[%c0_13, %c0_14] : memref<8x1xi32, #tpu.memory_space<vmem>>, vector<8x1xi32>
    %43 = vector.broadcast %42 : vector<8x1xi32> to vector<8x128xi32>
    %44 = arith.cmpi eq, %33, %43 : vector<8x128xi32>
    %cst_15 = arith.constant 0.000000e+00 : f32
    %45 = vector.broadcast %cst_15 : f32 to vector<8x128xf32>
    %46 = arith.select %44, %37, %45 : vector<8x128xi1>, vector<8x128xf32>
    %cst_16 = arith.constant dense<0.000000e+00> : vector<8xf32>
    %47 = vector.multi_reduction <add>, %46, %cst_16 [1] : vector<8x128xf32> to vector<8xf32>
    %48 = vector.shape_cast %47 : vector<8xf32> to vector<8x1xf32>
    %49 = arith.subf %41, %48 : vector<8x1xf32>
    %c0_17 = arith.constant 0 : index
    %c0_18 = arith.constant 0 : index
    %50 = vector.load %arg6[%c0_17, %c0_18] : memref<8x1xf32, #tpu.memory_space<vmem>>, vector<8x1xf32>
    %51 = arith.mulf %49, %50 : vector<8x1xf32>
    %52 = tpu.bitcast %31 : vector<8x128xf32> -> vector<8x128xi32>
    %c31_i32 = arith.constant 31 : i32
    %53 = vector.broadcast %c31_i32 : i32 to vector<8x128xi32>
    %54 = arith.shrsi %52, %53 : vector<8x128xi32>
    %c2147483647_i32 = arith.constant 2147483647 : i32
    %55 = vector.broadcast %c2147483647_i32 : i32 to vector<8x128xi32>
    %56 = arith.andi %54, %55 : vector<8x128xi32>
    %57 = arith.xori %52, %56 : vector<8x128xi32>
    %c-128_i32 = arith.constant -128 : i32
    %58 = vector.broadcast %c-128_i32 : i32 to vector<8x128xi32>
    %59 = arith.andi %57, %58 : vector<8x128xi32>
    %c127_i32 = arith.constant 127 : i32
    %60 = vector.broadcast %c127_i32 : i32 to vector<8x128xi32>
    %61 = arith.subi %60, %33 : vector<8x128xi32>
    %62 = arith.ori %59, %61 : vector<8x128xi32>
    %63 = tpu.iota {dimensions = array<i32: 1>} : vector<8x128xi32>
    %c0_i32 = arith.constant 0 : i32
    %64 = vector.broadcast %c0_i32 : i32 to vector<8x128xi32>
    %cst_19 = arith.constant dense<-2147483648> : vector<8xi32>
    %65 = vector.multi_reduction <maxsi>, %62, %cst_19 [1] : vector<8x128xi32> to vector<8xi32>
    %66 = vector.shape_cast %65 : vector<8xi32> to vector<8x1xi32>
    %c127_i32_20 = arith.constant 127 : i32
    %67 = vector.broadcast %c127_i32_20 : i32 to vector<8x1xi32>
    %68 = arith.andi %66, %67 : vector<8x1xi32>
    %c127_i32_21 = arith.constant 127 : i32
    %69 = vector.broadcast %c127_i32_21 : i32 to vector<8x1xi32>
    %70 = arith.subi %69, %68 : vector<8x1xi32>
    %c0_i32_22 = arith.constant 0 : i32
    %71 = vector.broadcast %c0_i32_22 : i32 to vector<8x128xi32>
    %72 = arith.cmpi eq, %63, %71 : vector<8x128xi32>
    %73 = vector.shape_cast %70 : vector<8x1xi32> to vector<8x1xi32>
    %74 = vector.broadcast %73 : vector<8x1xi32> to vector<8x128xi32>
    %75 = arith.select %72, %74, %64 : vector<8x128xi1>, vector<8x128xi32>
    %76 = vector.broadcast %66 : vector<8x1xi32> to vector<8x128xi32>
    %77 = arith.cmpi eq, %62, %76 : vector<8x128xi32>
    %c-2147483647_i32 = arith.constant -2147483647 : i32
    %78 = vector.broadcast %c-2147483647_i32 : i32 to vector<8x128xi32>
    %79 = arith.select %77, %78, %62 : vector<8x128xi1>, vector<8x128xi32>
    %cst_23 = arith.constant dense<-2147483648> : vector<8xi32>
    %80 = vector.multi_reduction <maxsi>, %79, %cst_23 [1] : vector<8x128xi32> to vector<8xi32>
    %81 = vector.shape_cast %80 : vector<8xi32> to vector<8x1xi32>
    %c127_i32_24 = arith.constant 127 : i32
    %82 = vector.broadcast %c127_i32_24 : i32 to vector<8x1xi32>
    %83 = arith.andi %81, %82 : vector<8x1xi32>
    %c127_i32_25 = arith.constant 127 : i32
    %84 = vector.broadcast %c127_i32_25 : i32 to vector<8x1xi32>
    %85 = arith.subi %84, %83 : vector<8x1xi32>
    %c1_i32 = arith.constant 1 : i32
    %86 = vector.broadcast %c1_i32 : i32 to vector<8x128xi32>
    %87 = arith.cmpi eq, %63, %86 : vector<8x128xi32>
    %88 = vector.shape_cast %85 : vector<8x1xi32> to vector<8x1xi32>
    %89 = vector.broadcast %88 : vector<8x1xi32> to vector<8x128xi32>
    %90 = arith.select %87, %89, %75 : vector<8x128xi1>, vector<8x128xi32>
    %91 = vector.broadcast %81 : vector<8x1xi32> to vector<8x128xi32>
    %92 = arith.cmpi eq, %79, %91 : vector<8x128xi32>
    %c-2147483647_i32_26 = arith.constant -2147483647 : i32
    %93 = vector.broadcast %c-2147483647_i32_26 : i32 to vector<8x128xi32>
    %94 = arith.select %92, %93, %79 : vector<8x128xi1>, vector<8x128xi32>
    %cst_27 = arith.constant dense<-2147483648> : vector<8xi32>
    %95 = vector.multi_reduction <maxsi>, %94, %cst_27 [1] : vector<8x128xi32> to vector<8xi32>
    %96 = vector.shape_cast %95 : vector<8xi32> to vector<8x1xi32>
    %c127_i32_28 = arith.constant 127 : i32
    %97 = vector.broadcast %c127_i32_28 : i32 to vector<8x1xi32>
    %98 = arith.andi %96, %97 : vector<8x1xi32>
    %c127_i32_29 = arith.constant 127 : i32
    %99 = vector.broadcast %c127_i32_29 : i32 to vector<8x1xi32>
    %100 = arith.subi %99, %98 : vector<8x1xi32>
    %c2_i32 = arith.constant 2 : i32
    %101 = vector.broadcast %c2_i32 : i32 to vector<8x128xi32>
    %102 = arith.cmpi eq, %63, %101 : vector<8x128xi32>
    %103 = vector.shape_cast %100 : vector<8x1xi32> to vector<8x1xi32>
    %104 = vector.broadcast %103 : vector<8x1xi32> to vector<8x128xi32>
    %105 = arith.select %102, %104, %90 : vector<8x128xi1>, vector<8x128xi32>
    %106 = vector.broadcast %96 : vector<8x1xi32> to vector<8x128xi32>
    %107 = arith.cmpi eq, %94, %106 : vector<8x128xi32>
    %c-2147483647_i32_30 = arith.constant -2147483647 : i32
    %108 = vector.broadcast %c-2147483647_i32_30 : i32 to vector<8x128xi32>
    %109 = arith.select %107, %108, %94 : vector<8x128xi1>, vector<8x128xi32>
    %cst_31 = arith.constant dense<-2147483648> : vector<8xi32>
    %110 = vector.multi_reduction <maxsi>, %109, %cst_31 [1] : vector<8x128xi32> to vector<8xi32>
    %111 = vector.shape_cast %110 : vector<8xi32> to vector<8x1xi32>
    %c127_i32_32 = arith.constant 127 : i32
    %112 = vector.broadcast %c127_i32_32 : i32 to vector<8x1xi32>
    %113 = arith.andi %111, %112 : vector<8x1xi32>
    %c127_i32_33 = arith.constant 127 : i32
    %114 = vector.broadcast %c127_i32_33 : i32 to vector<8x1xi32>
    %115 = arith.subi %114, %113 : vector<8x1xi32>
    %c3_i32 = arith.constant 3 : i32
    %116 = vector.broadcast %c3_i32 : i32 to vector<8x128xi32>
    %117 = arith.cmpi eq, %63, %116 : vector<8x128xi32>
    %118 = vector.shape_cast %115 : vector<8x1xi32> to vector<8x1xi32>
    %119 = vector.broadcast %118 : vector<8x1xi32> to vector<8x128xi32>
    %120 = arith.select %117, %119, %105 : vector<8x128xi1>, vector<8x128xi32>
    %121 = vector.broadcast %111 : vector<8x1xi32> to vector<8x128xi32>
    %122 = arith.cmpi eq, %109, %121 : vector<8x128xi32>
    %c-2147483647_i32_34 = arith.constant -2147483647 : i32
    %123 = vector.broadcast %c-2147483647_i32_34 : i32 to vector<8x128xi32>
    %124 = arith.select %122, %123, %109 : vector<8x128xi1>, vector<8x128xi32>
    %cst_35 = arith.constant dense<-2147483648> : vector<8xi32>
    %125 = vector.multi_reduction <maxsi>, %124, %cst_35 [1] : vector<8x128xi32> to vector<8xi32>
    %126 = vector.shape_cast %125 : vector<8xi32> to vector<8x1xi32>
    %c127_i32_36 = arith.constant 127 : i32
    %127 = vector.broadcast %c127_i32_36 : i32 to vector<8x1xi32>
    %128 = arith.andi %126, %127 : vector<8x1xi32>
    %c127_i32_37 = arith.constant 127 : i32
    %129 = vector.broadcast %c127_i32_37 : i32 to vector<8x1xi32>
    %130 = arith.subi %129, %128 : vector<8x1xi32>
    %c4_i32 = arith.constant 4 : i32
    %131 = vector.broadcast %c4_i32 : i32 to vector<8x128xi32>
    %132 = arith.cmpi eq, %63, %131 : vector<8x128xi32>
    %133 = vector.shape_cast %130 : vector<8x1xi32> to vector<8x1xi32>
    %134 = vector.broadcast %133 : vector<8x1xi32> to vector<8x128xi32>
    %135 = arith.select %132, %134, %120 : vector<8x128xi1>, vector<8x128xi32>
    %136 = tpu.bitcast %51 : vector<8x1xf32> -> vector<8x1xi32>
    %c5_i32 = arith.constant 5 : i32
    %137 = vector.broadcast %c5_i32 : i32 to vector<8x128xi32>
    %138 = arith.cmpi eq, %63, %137 : vector<8x128xi32>
    %139 = vector.shape_cast %136 : vector<8x1xi32> to vector<8x1xi32>
    %140 = vector.broadcast %139 : vector<8x1xi32> to vector<8x128xi32>
    %141 = arith.select %138, %140, %135 : vector<8x128xi1>, vector<8x128xi32>
    %c0_38 = arith.constant 0 : index
    %c0_39 = arith.constant 0 : index
    %142 = vector.load %arg8[%c0_38, %c0_39] : memref<8x128xi32, #tpu.memory_space<vmem>>, vector<8x128xi32>
    tpu.vector_store %arg8[%c0_38, %c0_39], %141 {strides = array<i32>} : memref<8x128xi32, #tpu.memory_space<vmem>>, vector<8x128xi32>,
    return
  }
  func.func @transform_0(%arg0: i32) -> i32 {
    %c0_i32 = arith.constant 0 : i32
    %c0_i32_0 = arith.constant 0 : i32
    return %c0_i32 : i32
  }
  func.func @transform_1(%arg0: i32) -> (i32, i32) {
    %c0_i32 = arith.constant 0 : i32
    %c0_i32_0 = arith.constant 0 : i32
    return %arg0, %c0_i32 : i32, i32
  }
  func.func @transform_2(%arg0: i32) -> (i32, i32) {
    %c0_i32 = arith.constant 0 : i32
    %c0_i32_0 = arith.constant 0 : i32
    return %arg0, %c0_i32 : i32, i32
  }
  func.func @transform_3(%arg0: i32) -> (i32, i32) {
    %c0_i32 = arith.constant 0 : i32
    %c0_i32_0 = arith.constant 0 : i32
    %c0_i32_1 = arith.constant 0 : i32
    return %c0_i32, %c0_i32_0 : i32, i32
  }
  func.func @transform_4(%arg0: i32) -> (i32, i32) {
    %c0_i32 = arith.constant 0 : i32
    %c0_i32_0 = arith.constant 0 : i32
    return %arg0, %c0_i32 : i32, i32
  }
  func.func @transform_5(%arg0: i32) -> (i32, i32) {
    %c0_i32 = arith.constant 0 : i32
    %c0_i32_0 = arith.constant 0 : i32
    return %arg0, %c0_i32 : i32, i32
  }
  func.func @transform_6(%arg0: i32) -> (i32, i32) {
    %c0_i32 = arith.constant 0 : i32
    %c0_i32_0 = arith.constant 0 : i32
    return %arg0, %c0_i32 : i32, i32
  }
  func.func @transform_7(%arg0: i32) -> (i32, i32) {
    %c0_i32 = arith.constant 0 : i32
    %c0_i32_0 = arith.constant 0 : i32
    return %arg0, %c0_i32 : i32, i32
  }
}

</mosaic_0001>

<llo_original>
// kernel: tpu_custom_call.1
$region0: #{tpu_custom_call.1}
  #allocation0 [shape = 'u32[]', space=smem, size = 0x4, offset = 0x4, fixed_abs, tag = 'smem constant byte address 0x4 - core index']
  #allocation1 [shape = 'u32[144,128]{1,0:T(1,128)}', space=vmem, size = 0x12000, scoped, tag = 'internal scratch']
  %s0 = inlined_call_operand.vmem [shape: f32[2], index: 0, kind: input, shape index: {}]
  %s1 = inlined_call_operand.vmem [shape: f32[8,128], index: 1, kind: input, shape index: {}]
  %s2 = inlined_call_operand.vmem [shape: f32[8,128], index: 2, kind: input, shape index: {}]
  %s3 = inlined_call_operand.vmem [shape: f32[1,128], index: 3, kind: input, shape index: {}]
  %s4 = inlined_call_operand.vmem [shape: s32[8,1], index: 4, kind: input, shape index: {}]
  %s5 = inlined_call_operand.vmem [shape: f32[8,1], index: 5, kind: input, shape index: {}]
  %s6 = inlined_call_operand.hbm [shape: f32[8,128], index: 6, kind: output, shape index: {0}]
  %s7 = inlined_call_operand.hbm [shape: s32[8,128], index: 7, kind: output, shape index: {1}]
  %8 = xla_tuple %s6, %s7
  %s9 = sld [smem:[#allocation0]]
  $region46: #{tpu_custom_call.1} parent=0
    _
  %s11 = ssub.s32 1, %s9
  %s12 = scalar_select 0, %s11, %s9
  $region1: #{tpu_custom_call.1} parent=0
    #allocation2 [shape = 'u8[512]{0}', space=smem, size = 0x200, scoped, tag = 'input window, operand 0, single buffered']
    #allocation3 [shape = 's32[1]{0}', space=sflag, size = 0x4, scoped, tag = 'scoped memory for tpu_custom_call.1']
    #allocation4 [shape = 's32[1]{0}', space=sflag, size = 0x4, scoped, tag = 'scoped memory for tpu_custom_call.1']
    #allocation5 [shape = 'u8[4096]{0}', space=vmem, size = 0x1000, scoped, tag = 'output window, operand 0, single buffered']
    #allocation6 [shape = 'u8[4096]{0}', space=vmem, size = 0x1000, scoped, tag = 'output window, operand 1, single buffered']
    #allocation7 [shape = 's32[1]{0}', space=sflag, size = 0x4, scoped, tag = 'scoped memory for tpu_custom_call.1']
    %13 = vsyncpa [#allocation4], 0
    %14 = vsyncpa [#allocation3], 0
    %15 = vsyncpa [#allocation7], 0
    // Predicated region
    $region2: #{tpu_custom_call.1} parent=1 // pred_check
      _
    $region3: #{tpu_custom_call.1} parent=1 // pred_check_branch
      %17 = sbr.rel (0) target = $region5
    $region4: #{tpu_custom_call.1} parent=1 // pred_region
      %s19 = ssub.s32 16, 16
      %20 = vsyncadd [#allocation4], %s19
      %s22 = sshll.u32 %s0, 4
      %s23 = int_to_ptr.vmem [resolvable:$true] %s22
      %25 = dma.vmem_to_smem %s23, 16, [#allocation2], [#allocation4]
    $region5: #{tpu_custom_call.1} parent=1 // pred_fallthru
      _
    // Predicated region
    $region6: #{tpu_custom_call.1} parent=1 // pred_check
      _
    $region7: #{tpu_custom_call.1} parent=1 // pred_check_branch
      %27 = sbr.rel (0) target = $region9
    $region8: #{tpu_custom_call.1} parent=1 // pred_region
      _
    $region9: #{tpu_custom_call.1} parent=1 // pred_fallthru
      _
    // Predicated region
    $region10: #{tpu_custom_call.1} parent=1 // pred_check
      _
    $region11: #{tpu_custom_call.1} parent=1 // pred_check_branch
      %29 = sbr.rel (0) target = $region13
    $region12: #{tpu_custom_call.1} parent=1 // pred_region
      _
    $region13: #{tpu_custom_call.1} parent=1 // pred_fallthru
      _
    // Predicated region
    $region14: #{tpu_custom_call.1} parent=1 // pred_check
      _
    $region15: #{tpu_custom_call.1} parent=1 // pred_check_branch
      %31 = sbr.rel (0) target = $region17
    $region16: #{tpu_custom_call.1} parent=1 // pred_region
      _
    $region17: #{tpu_custom_call.1} parent=1 // pred_fallthru
      _
    // Predicated region
    $region18: #{tpu_custom_call.1} parent=1 // pred_check
      _
    $region19: #{tpu_custom_call.1} parent=1 // pred_check_branch
      %33 = sbr.rel (0) target = $region21
    $region20: #{tpu_custom_call.1} parent=1 // pred_region
      _
    $region21: #{tpu_custom_call.1} parent=1 // pred_fallthru
      _
    // Predicated region
    $region22: #{tpu_custom_call.1} parent=1 // pred_check
      _
    $region23: #{tpu_custom_call.1} parent=1 // pred_check_branch
      %35 = sbr.rel (0) target = $region25
    $region24: #{tpu_custom_call.1} parent=1 // pred_region
      _
    $region25: #{tpu_custom_call.1} parent=1 // pred_fallthru
      _
    // Predicated region
    $region26: #{tpu_custom_call.1} parent=1 // pred_check
      _
    $region27: #{tpu_custom_call.1} parent=1 // pred_check_branch
      %37 = sbr.rel (0) target = $region29
    $region28: #{tpu_custom_call.1} parent=1 // pred_region
      %38 = dma.done [#allocation4], 16
    $region29: #{tpu_custom_call.1} parent=1 // pred_fallthru
      _
    %39 = sfence
    %v40 = vld [vmem:[%s1] sm:$0xff]
    %v41 = vld [vmem:[%s2] sm:$0xff]
    %42 = vmax.xlane.f32.xlu0 %v40
    %v43 = vpop.xlane.xlu0 %42
    %v44 = vsub.f32 %v40, %v43
    %v45 = vmul.f32 %v44, 1.442695
    %v46 = vpow.pop %v45
    %47 = vadd.xlane.f32.xlu0 %v46
    %v48 = vpop.xlane.xlu0 %47
    %v49 = vlog2.pop %v48
    %v50 = vmul.f32 %v49, 0.6931472
    %v51 = vsub.f32 %v44, %v50
    %52 = vmax.xlane.f32.xlu0 %v41
    %v53 = vpop.xlane.xlu0 %52
    %v54 = vsub.f32 %v41, %v53
    %v55 = vmul.f32 %v54, 1.442695
    %v56 = vpow.pop %v55
    %57 = vadd.xlane.f32.xlu0 %v56
    %v58 = vpop.xlane.xlu0 %57
    %v59 = vlog2.pop %v58
    %v60 = vmul.f32 %v59, 0.6931472
    %v61 = vsub.f32 %v54, %v60
    %s62 = sld [smem:[#allocation2]]
    %v63 = vstv %s62
    %v64 = vmul.f32 %v51, %v63
    %s65 = sld [smem:[#allocation2 + $0x1]]
    %v66 = vstv %s65
    %v67 = vmul.f32 %v61, %v66
    %v68 = vadd.f32 %v64, %v67
    %v69 = vld [vmem:[%s3] sm:$0x1]
    %v71 = vlaneseq
    %v72 = vshrl.u32 %v71, 7
    %v73 = vsub.s32 0, %v72
    %v74 = vrot.slane %v69, %v73
    %v76 = vadd.f32 %v68, %v74
    %77 = vst [vmem:[#allocation5] sm:$0xff] %v76
    %v78 = vlaneseq
    %v79 = vand.u32 %v78, 127
    %80 = vmax.xlane.f32.xlu0 %v76
    %v81 = vpop.xlane.xlu0 %80
    %v82 = vsub.f32 %v76, %v81
    %v83 = vmul.f32 %v82, 1.442695
    %v84 = vpow.pop %v83
    %85 = vadd.xlane.f32.xlu0 %v84
    %v86 = vpop.xlane.xlu0 %85
    %v87 = vlog2.pop %v86
    %v88 = vmul.f32 %v87, 0.6931472
    %v89 = vld [vmem:[%s4] sm:$0xff]
    %90 = vset.pattern.permute.xlu0 0
    %91 = vperm.xlu0 %90, %v89
    %v92 = vpop.permute.xlu0 %91
    %vm93 = vcmp.eq.s32.totalorder %v79, %v92
    %v94 = vsel %vm93, %v82, 0.0
    %95 = vadd.xlane.f32.xlu0 %v94
    %v96 = vpop.xlane.xlu0 %95
    %v97 = vsub.f32 %v88, %v96
    %v98 = vld [vmem:[%s5] sm:$0xff]
    %v99 = vmul.f32 %v97, %v98
    %v101 = vshra.s32 %v76, 31
    %v102 = vand.u32 %v101, 2147483647
    %v103 = vxor.u32 %v76, %v102
    %v104 = vand.u32 %v103, 4294967168
    %v105 = vsub.s32 127, %v79
    %v106 = vor.u32 %v104, %v105
    %v107 = vand.u32 %v106, 65535
    %v108 = vshra.s32 %v106, 16
    %v109 = vcvt.s32.f32 %v107
    %v110 = vcvt.s32.f32 %v108
    %111 = vmax.xlane.f32.xlu0 %v110
    %v112 = vpop.xlane.xlu0 %111
    %vm113 = vcmp.eq.f32.partialorder %v110, %v112
    %v114 = vsel %vm113, %v109, -inf
    %115 = vmax.xlane.f32.xlu0 %v114
    %v116 = vpop.xlane.xlu0 %115
    %v117 = vcvt.f32.s32 %v116
    %v118 = vcvt.f32.s32 %v112
    %v119 = vshll.u32 %v118, 16
    %v120 = vadd.s32 %v119, %v117
    %v121 = vand.u32 %v120, 127
    %v122 = vsub.s32 127, %v121
    %vm123 = vcmp.eq.s32.totalorder %v79, 0
    %v124 = vsel %vm123, %v122, 0
    %vm125 = vcmp.eq.s32.totalorder %v106, %v120
    %v126 = vsel %vm125, 2147483649, %v106
    %v127 = vand.u32 %v126, 65535
    %v128 = vshra.s32 %v126, 16
    %v129 = vcvt.s32.f32 %v127
    %v130 = vcvt.s32.f32 %v128
    %131 = vmax.xlane.f32.xlu0 %v130
    %v132 = vpop.xlane.xlu0 %131
    %vm133 = vcmp.eq.f32.partialorder %v130, %v132
    %v134 = vsel %vm133, %v129, -inf
    %135 = vmax.xlane.f32.xlu0 %v134
    %v136 = vpop.xlane.xlu0 %135
    %v137 = vcvt.f32.s32 %v136
    %v138 = vcvt.f32.s32 %v132
    %v139 = vshll.u32 %v138, 16
    %v140 = vadd.s32 %v139, %v137
    %v141 = vand.u32 %v140, 127
    %v142 = vsub.s32 127, %v141
    %vm143 = vcmp.eq.s32.totalorder %v79, 1
    %v144 = vsel %vm143, %v142, %v124
    %vm145 = vcmp.eq.s32.totalorder %v126, %v140
    %v146 = vsel %vm145, 2147483649, %v126
    %v147 = vand.u32 %v146, 65535
    %v148 = vshra.s32 %v146, 16
    %v149 = vcvt.s32.f32 %v147
    %v150 = vcvt.s32.f32 %v148
    %151 = vmax.xlane.f32.xlu0 %v150
    %v152 = vpop.xlane.xlu0 %151
    %vm153 = vcmp.eq.f32.partialorder %v150, %v152
    %v154 = vsel %vm153, %v149, -inf
    %155 = vmax.xlane.f32.xlu0 %v154
    %v156 = vpop.xlane.xlu0 %155
    %v157 = vcvt.f32.s32 %v156
    %v158 = vcvt.f32.s32 %v152
    %v159 = vshll.u32 %v158, 16
    %v160 = vadd.s32 %v159, %v157
    %v161 = vand.u32 %v160, 127
    %v162 = vsub.s32 127, %v161
    %vm163 = vcmp.eq.s32.totalorder %v79, 2
    %v164 = vsel %vm163, %v162, %v144
    %vm165 = vcmp.eq.s32.totalorder %v146, %v160
    %v166 = vsel %vm165, 2147483649, %v146
    %v167 = vand.u32 %v166, 65535
    %v168 = vshra.s32 %v166, 16
    %v169 = vcvt.s32.f32 %v167
    %v170 = vcvt.s32.f32 %v168
    %171 = vmax.xlane.f32.xlu0 %v170
    %v172 = vpop.xlane.xlu0 %171
    %vm173 = vcmp.eq.f32.partialorder %v170, %v172
    %v174 = vsel %vm173, %v169, -inf
    %175 = vmax.xlane.f32.xlu0 %v174
    %v176 = vpop.xlane.xlu0 %175
    %v177 = vcvt.f32.s32 %v176
    %v178 = vcvt.f32.s32 %v172
    %v179 = vshll.u32 %v178, 16
    %v180 = vadd.s32 %v179, %v177
    %v181 = vand.u32 %v180, 127
    %v182 = vsub.s32 127, %v181
    %vm183 = vcmp.eq.s32.totalorder %v79, 3
    %v184 = vsel %vm183, %v182, %v164
    %vm185 = vcmp.eq.s32.totalorder %v166, %v180
    %v186 = vsel %vm185, 2147483649, %v166
    %v187 = vand.u32 %v186, 65535
    %v188 = vshra.s32 %v186, 16
    %v189 = vcvt.s32.f32 %v187
    %v190 = vcvt.s32.f32 %v188
    %191 = vmax.xlane.f32.xlu0 %v190
    %v192 = vpop.xlane.xlu0 %191
    %vm193 = vcmp.eq.f32.partialorder %v190, %v192
    %v194 = vsel %vm193, %v189, -inf
    %195 = vmax.xlane.f32.xlu0 %v194
    %v196 = vpop.xlane.xlu0 %195
    %v197 = vcvt.f32.s32 %v196
    %v198 = vcvt.f32.s32 %v192
    %v199 = vshll.u32 %v198, 16
    %v200 = vadd.s32 %v199, %v197
    %v201 = vand.u32 %v200, 127
    %v202 = vsub.s32 127, %v201
    %vm203 = vcmp.eq.s32.totalorder %v79, 4
    %v204 = vsel %vm203, %v202, %v184
    %vm206 = vcmp.eq.s32.totalorder %v79, 5
    %207 = vset.pattern.permute.xlu0 0
    %208 = vperm.xlu0 %207, %v99
    %v209 = vpop.permute.xlu0 %208
    %v210 = vsel %vm206, %v209, %v204
    %211 = vst [vmem:[#allocation6] sm:$0xff] %v210
    // Predicated region
    $region30: #{tpu_custom_call.1} parent=1 // pred_check
      _
    $region31: #{tpu_custom_call.1} parent=1 // pred_check_branch
      %213 = sbr.rel (0) target = $region33
    $region32: #{tpu_custom_call.1} parent=1 // pred_region
      %s215 = ssub.s32 128, 128
      %216 = vsyncadd [#allocation3], %s215
      %s218 = sshll.u32 [#allocation5], 4
      %s219 = int_to_ptr.vmem [resolvable:$true] %s218
      %221 = dma.vmem_to_hbm [thread:$0]  %s219, 128, %s6, [#allocation3]
    $region33: #{tpu_custom_call.1} parent=1 // pred_fallthru
      _
    // Predicated region
    $region34: #{tpu_custom_call.1} parent=1 // pred_check
      _
    $region35: #{tpu_custom_call.1} parent=1 // pred_check_branch
      %223 = sbr.rel (0) target = $region37
    $region36: #{tpu_custom_call.1} parent=1 // pred_region
      %s225 = ssub.s32 128, 128
      %226 = vsyncadd [#allocation7], %s225
      %s228 = sshll.u32 [#allocation6], 4
      %s229 = int_to_ptr.vmem [resolvable:$true] %s228
      %231 = dma.vmem_to_hbm [thread:$0]  %s229, 128, %s7, [#allocation7]
    $region37: #{tpu_custom_call.1} parent=1 // pred_fallthru
      _
    // Predicated region
    $region38: #{tpu_custom_call.1} parent=1 // pred_check
      _
    $region39: #{tpu_custom_call.1} parent=1 // pred_check_branch
      %233 = sbr.rel (0) target = $region41
    $region40: #{tpu_custom_call.1} parent=1 // pred_region
      %234 = dma.done [#allocation3], 128
    $region41: #{tpu_custom_call.1} parent=1 // pred_fallthru
      _
    // Predicated region
    $region42: #{tpu_custom_call.1} parent=1 // pred_check
      _
    $region43: #{tpu_custom_call.1} parent=1 // pred_check_branch
      %236 = sbr.rel (0) target = $region45
    $region44: #{tpu_custom_call.1} parent=1 // pred_region
      %237 = dma.done [#allocation7], 128
    $region45: #{tpu_custom_call.1} parent=1 // pred_fallthru
      _
    %238 = vsyncpa [#allocation3], 1
    %239 = vsyncpa [#allocation7], 1
    %240 = vsyncpa [#allocation4], 1

</llo_original>
